<compile_context>
chip_gen: v7x
topology: tpu7x:2x2x1
jax: 0.10.0
libtpu: 0.0.40
codegen_flags: <defaults>
</compile_context>

<pallas_src>
import functools
import math

import jax
import jax.numpy as jnp
from jax import lax
from jax.experimental import pallas as pl
from jax.experimental.pallas import tpu as pltpu


_TILE_BYTES = 8 * 1024 * 1024          # cap for one logits buffer
_VMEM_BUDGET_BYTES = 40 * 1024 * 1024  # cap for total live VMEM (buffers+temps)
_VMEM_LIMIT_CAP = 48 * 1024 * 1024     # scoped-VMEM limit handed to Mosaic
_MIN_GRID = 8                          # keep >= 8 grid steps when batch permits
_MAX_ROWS = 1024                       # 512-1024 rows already hit HBM roofline


def _label_smoothing_kernel(logits_ref, tgt_ref, out_ref, *,
                            smoothing_value, confidence, const_term,
                            ignore_index, batch_size):
    i = pl.program_id(0)

    xr = logits_ref[...]                                   # (tb, V) raw dtype
    x = xr.astype(jnp.float32)                             # (tb, V) f32
    tgt = tgt_ref[...]                                     # (tb, 1) int32
    tb, V = x.shape

    # Row validity: inside the real batch AND not the ignored label.  The last
    # partial block may contain undefined (padded) rows; masking with where
    # guarantees any NaN/Inf produced there never reaches the sum.
    row = i * tb + lax.broadcasted_iota(jnp.int32, (tb, 1), 0)
    valid = (row < batch_size) & (tgt != ignore_index)     # (tb, 1) bool

    # Row max and target-logit gather on the raw tile (exact; for bf16 inputs
    # these passes run 2x-packed and avoid extra f32 temporaries).
    m = jnp.max(xr, axis=-1, keepdims=True).astype(jnp.float32)      # (tb, 1)
    col = lax.broadcasted_iota(jnp.int32, (tb, V), 1)
    x_tgt = jnp.sum(jnp.where(col == tgt, xr, jnp.zeros_like(xr)),
                    axis=-1, keepdims=True).astype(jnp.float32)      # (tb, 1)

    # LSE and row sum in f32 (the exp is the only full-tile EUP pass).
    lse = m + jnp.log(jnp.sum(jnp.exp(x - m), axis=-1, keepdims=True))
    x_sum = jnp.sum(x, axis=-1, keepdims=True)                       # (tb, 1)

    row_loss = (const_term
                + (confidence - smoothing_value) * (lse - x_tgt)
                + smoothing_value * (V * lse - x_sum))               # (tb, 1)
    row_loss = jnp.where(valid, row_loss, 0.0)

    # Per-block partial sum, broadcast across a lane-dense (1, 1, 128) tile
    # (single unmasked store, no iotas / compares in the epilogue).
    s = jnp.sum(row_loss, axis=0, keepdims=True)                     # (1, 1)
    out_ref[...] = jnp.broadcast_to(s, (1, 1, 128))


def _vmem_limit_bytes():
    try:
        phys = int(pltpu.get_tpu_info().vmem_capacity_bytes)
    except Exception:
        phys = 64 * 1024 * 1024      # conservative: v7x has the smallest VMEM
    return int(min(int(phys * 0.75), _VMEM_LIMIT_CAP))


def _round_up(x, m):
    return ((x + m - 1) // m) * m


def _round_dn(x, m):
    return (x // m) * m


def _pick_block_rows(batch, vocab, in_itemsize):
    gran = max(8, 32 // max(1, in_itemsize))      # 8 rows f32, 16 bf16, ...

    # (a) cap one logits buffer at ~8 MiB.
    rows_tile = _TILE_BYTES // max(1, vocab * in_itemsize)
    # (b) keep total live VMEM under budget: 2x double-buffered input tile,
    #     ~6 f32-sized full-tile temporaries (upcast, exp, iota, select, ...)
    #     and the (rows, 128)-padded int32 target block (double-buffered).
    per_row = 2 * vocab * in_itemsize + 6 * vocab * 4 + 2 * 128 * 4
    rows_vmem = _VMEM_BUDGET_BYTES // per_row
    # (c) keep at least _MIN_GRID grid steps when the batch permits, so the
    #     pipeline has DMA to overlap and v7x can split across both TCs.
    rows_grid = _round_up(pl.cdiv(batch, _MIN_GRID), gran)
    # (d) don't exceed the (granularity-rounded) batch.
    rows_batch = _round_up(batch, gran)

    rows = min(rows_tile, rows_vmem, rows_grid, rows_batch, _MAX_ROWS)
    rows = max(gran, _round_dn(rows, gran))
    return int(rows)


def label_smoothing_loss(output, target, *, label_smoothing, tgt_vocab_size,
                         ignore_index=-100, block_rows=None):
    """output: (B, V) float logits (f32 or bf16); target: (B,) int indices.
    Rows whose target == ignore_index are dropped (as in the PyTorch module)."""
    assert 0.0 < label_smoothing <= 1.0
    B, V = output.shape
    assert V == tgt_vocab_size

    smoothing_value = label_smoothing / (tgt_vocab_size - 1)
    confidence = 1.0 - label_smoothing
    # confidence == 0 (label_smoothing == 1.0) contributes 0 to q*log q.
    c_log_c = confidence * math.log(confidence) if confidence > 0.0 else 0.0
    const_term = (c_log_c
                  + (tgt_vocab_size - 1) * smoothing_value * math.log(smoothing_value))

    in_itemsize = jnp.dtype(output.dtype).itemsize
    if block_rows is None:
        block_rows = _pick_block_rows(B, V, in_itemsize)

    grid = pl.cdiv(B, block_rows)
    tgt2d = target.astype(jnp.int32).reshape(B, 1)

    kernel = functools.partial(
        _label_smoothing_kernel,
        smoothing_value=float(smoothing_value),
        confidence=float(confidence),
        const_term=float(const_term),
        ignore_index=int(ignore_index),
        batch_size=int(B),
    )

    partials = pl.pallas_call(
        kernel,
        out_shape=jax.ShapeDtypeStruct((grid, 1, 128), jnp.float32),
        grid_spec=pltpu.PrefetchScalarGridSpec(
            num_scalar_prefetch=0,
            grid=(grid,),
            in_specs=[
                pl.BlockSpec((block_rows, V), lambda i: (i, 0)),
                pl.BlockSpec((block_rows, 1), lambda i: (i, 0)),
            ],
            out_specs=pl.BlockSpec((1, 1, 128), lambda i: (i, 0, 0)),
        ),
        compiler_params=pltpu.CompilerParams(
            dimension_semantics=("parallel",),
            vmem_limit_bytes=_vmem_limit_bytes()),
    )(output, tgt2d)

    # Every lane of a block holds the same partial sum; reduce lane 0 only.
    return jnp.sum(partials[:, 0, 0])


def _reference_loss(output, target, label_smoothing, V, ignore_index):
    # Pure-JAX reference mirroring the PyTorch forward (eager, dynamic shapes OK).
    valid = target != ignore_index
    out = output[valid]
    tgt = target[valid]
    logp = jax.nn.log_softmax(out.astype(jnp.float32), axis=-1)
    sv = label_smoothing / (V - 1)
    conf = 1.0 - label_smoothing
    n = tgt.shape[0]
    q = jnp.full((n, V), sv, jnp.float32).at[jnp.arange(n), tgt].set(conf)
    return jnp.sum(q * (jnp.log(q) - logp))


if __name__ == "__main__":
    key = jax.random.PRNGKey(0)
    k1, k2 = jax.random.split(key)

    batch = 10
    vocab = 32
    label_smoothing = 0.1
    ignore_index = -1  # docstring convention: -1 is the ignored label

    logits = jax.random.normal(k1, (batch, vocab), dtype=jnp.float32)
    target = jax.random.randint(k2, (batch,), minval=-1, maxval=vocab,
                                dtype=jnp.int32)

    loss = label_smoothing_loss(
        logits, target,
        label_smoothing=label_smoothing,
        tgt_vocab_size=vocab,
        ignore_index=ignore_index,
    )
    loss = jax.block_until_ready(loss)

    ref = _reference_loss(logits, target, label_smoothing, vocab, ignore_index)
    assert jnp.allclose(loss, ref, rtol=1e-4, atol=1e-4), (loss, ref)

    print("KERNEL_OK")
</pallas_src>

<mosaic_0001>
module attributes {stable_mosaic.version = 11 : i64} {
  func.func @_label_smoothing_kernel(%arg0: i32, %arg1: memref<8x32xf32, #tpu.memory_space<vmem>>, %arg2: memref<8x1xi32, #tpu.memory_space<vmem>>, %arg3: memref<1x1x128xf32, #tpu.memory_space<vmem>>) attributes {dimension_semantics = [#tpu.dimension_semantics<parallel>], iteration_bounds = array<i64: 2>, scalar_prefetch = 0 : i64, scratch_operands = 0 : i64, tpu.core_type = #tpu.core_type<tc>, window_params = [{transform_indices = @transform_0, window_bounds = array<i64: 8, 32>}, {transform_indices = @transform_1, window_bounds = array<i64: 8, 1>}, {transform_indices = @transform_2, window_bounds = array<i64: 1, 1, 128>}]} {
    %c0 = arith.constant 0 : index
    %c0_0 = arith.constant 0 : index
    %0 = vector.load %arg1[%c0, %c0_0] : memref<8x32xf32, #tpu.memory_space<vmem>>, vector<8x32xf32>
    %c0_1 = arith.constant 0 : index
    %c0_2 = arith.constant 0 : index
    %1 = vector.load %arg2[%c0_1, %c0_2] : memref<8x1xi32, #tpu.memory_space<vmem>>, vector<8x1xi32>
    %c8_i32 = arith.constant 8 : i32
    %2 = arith.muli %arg0, %c8_i32 : i32
    %3 = tpu.iota {dimensions = array<i32: 0>} : vector<8x1xi32>
    %4 = vector.broadcast %2 : i32 to vector<8x1xi32>
    %5 = arith.addi %4, %3 : vector<8x1xi32>
    %c10_i32 = arith.constant 10 : i32
    %6 = vector.broadcast %c10_i32 : i32 to vector<8x1xi32>
    %7 = arith.cmpi slt, %5, %6 : vector<8x1xi32>
    %c-1_i32 = arith.constant -1 : i32
    %8 = vector.broadcast %c-1_i32 : i32 to vector<8x1xi32>
    %9 = arith.cmpi ne, %1, %8 : vector<8x1xi32>
    %10 = arith.andi %7, %9 : vector<8x1xi1>
    %cst = arith.constant dense<0xFF800000> : vector<8xf32>
    %11 = vector.multi_reduction <maximumf>, %0, %cst [1] : vector<8x32xf32> to vector<8xf32>
    %12 = vector.shape_cast %11 : vector<8xf32> to vector<8x1xf32>
    %13 = tpu.iota {dimensions = array<i32: 1>} : vector<8x32xi32>
    %14 = vector.broadcast %1 : vector<8x1xi32> to vector<8x32xi32>
    %15 = arith.cmpi eq, %13, %14 : vector<8x32xi32>
    %cst_3 = arith.constant 0.000000e+00 : f32
    %16 = vector.broadcast %cst_3 : f32 to vector<8x32xf32>
    %17 = arith.select %15, %0, %16 : vector<8x32xi1>, vector<8x32xf32>
    %cst_4 = arith.constant dense<0.000000e+00> : vector<8xf32>
    %18 = vector.multi_reduction <add>, %17, %cst_4 [1] : vector<8x32xf32> to vector<8xf32>
    %19 = vector.shape_cast %18 : vector<8xf32> to vector<8x1xf32>
    %20 = vector.broadcast %12 : vector<8x1xf32> to vector<8x32xf32>
    %21 = arith.subf %0, %20 : vector<8x32xf32>
    %22 = math.exp %21 : vector<8x32xf32>
    %cst_5 = arith.constant dense<0.000000e+00> : vector<8xf32>
    %23 = vector.multi_reduction <add>, %22, %cst_5 [1] : vector<8x32xf32> to vector<8xf32>
    %24 = vector.shape_cast %23 : vector<8xf32> to vector<8x1xf32>
    %25 = math.log %24 : vector<8x1xf32>
    %26 = arith.addf %12, %25 : vector<8x1xf32>
    %cst_6 = arith.constant dense<0.000000e+00> : vector<8xf32>
    %27 = vector.multi_reduction <add>, %0, %cst_6 [1] : vector<8x32xf32> to vector<8xf32>
    %28 = vector.shape_cast %27 : vector<8xf32> to vector<8x1xf32>
    %29 = arith.subf %26, %19 : vector<8x1xf32>
    %cst_7 = arith.constant 0.896774172 : f32
    %30 = vector.broadcast %cst_7 : f32 to vector<8x1xf32>
    %31 = arith.mulf %30, %29 : vector<8x1xf32>
    %cst_8 = arith.constant -0.668481708 : f32
    %32 = vector.broadcast %cst_8 : f32 to vector<8x1xf32>
    %33 = arith.addf %32, %31 : vector<8x1xf32>
    %cst_9 = arith.constant 3.200000e+01 : f32
    %34 = vector.broadcast %cst_9 : f32 to vector<8x1xf32>
    %35 = arith.mulf %34, %26 : vector<8x1xf32>
    %36 = arith.subf %35, %28 : vector<8x1xf32>
    %cst_10 = arith.constant 0.0032258064 : f32
    %37 = vector.broadcast %cst_10 : f32 to vector<8x1xf32>
    %38 = arith.mulf %37, %36 : vector<8x1xf32>
    %39 = arith.addf %33, %38 : vector<8x1xf32>
    %cst_11 = arith.constant 0.000000e+00 : f32
    %40 = vector.broadcast %cst_11 : f32 to vector<8x1xf32>
    %41 = arith.select %10, %39, %40 : vector<8x1xi1>, vector<8x1xf32>
    %cst_12 = arith.constant dense<0.000000e+00> : vector<1xf32>
    %42 = vector.multi_reduction <add>, %41, %cst_12 [0] : vector<8x1xf32> to vector<1xf32>
    %43 = vector.shape_cast %42 : vector<1xf32> to vector<1x1xf32>
    %44 = vector.shape_cast %43 : vector<1x1xf32> to vector<1x1x1xf32>
    %45 = vector.broadcast %44 : vector<1x1x1xf32> to vector<1x1x128xf32>
    %c0_13 = arith.constant 0 : index
    %c0_14 = arith.constant 0 : index
    %c0_15 = arith.constant 0 : index
    %46 = vector.load %arg3[%c0_13, %c0_14, %c0_15] : memref<1x1x128xf32, #tpu.memory_space<vmem>>, vector<1x1x128xf32>
    tpu.vector_store %arg3[%c0_13, %c0_14, %c0_15], %45 {strides = array<i32>} : memref<1x1x128xf32, #tpu.memory_space<vmem>>, vector<1x1x128xf32>,
    return
  }
  func.func @transform_0(%arg0: i32) -> (i32, i32) {
    %c0_i32 = arith.constant 0 : i32
    %c0_i32_0 = arith.constant 0 : i32
    return %arg0, %c0_i32 : i32, i32
  }
  func.func @transform_1(%arg0: i32) -> (i32, i32) {
    %c0_i32 = arith.constant 0 : i32
    %c0_i32_0 = arith.constant 0 : i32
    return %arg0, %c0_i32 : i32, i32
  }
  func.func @transform_2(%arg0: i32) -> (i32, i32, i32) {
    %c0_i32 = arith.constant 0 : i32
    %c0_i32_0 = arith.constant 0 : i32
    %c0_i32_1 = arith.constant 0 : i32
    return %arg0, %c0_i32, %c0_i32_0 : i32, i32, i32
  }
}

</mosaic_0001>

<llo_original>
// kernel: tpu_custom_call.1
$region0: #{tpu_custom_call.1}
  #allocation0 [shape = 'u32[]', space=smem, size = 0x4, offset = 0x4, fixed_abs, tag = 'smem constant byte address 0x4 - core index']
  #allocation1 [shape = 'u32[144,128]{1,0:T(1,128)}', space=vmem, size = 0x12000, scoped, tag = 'internal scratch']
  %s0 = inlined_call_operand.vmem [shape: f32[10,32], index: 0, kind: input, shape index: {}]
  %s1 = inlined_call_operand.vmem [shape: s32[10,1], index: 1, kind: input, shape index: {}]
  %s2 = inlined_call_operand.hbm [shape: f32[2,1,128], index: 2, kind: output, shape index: {}]
  %s3 = sld [smem:[#allocation0]]
  $region41: #{tpu_custom_call.1} parent=0
    _
  %s5 = ssub.s32 1, %s3
  %s6 = scalar_select 0, %s5, %s3
  $region1: #{tpu_custom_call.1} parent=0
    #allocation2 [shape = 'u8[1024]{0}', space=vmem, size = 0x400, scoped, tag = 'output window, operand 0']
    #allocation3 [shape = 's32[2]{0}', space=sflag, size = 0x8, scoped, tag = 'scoped memory for tpu_custom_call.1']
    %7 = vsyncpa [#allocation3], 0
    %s8 = scalar_lea.sflag [#allocation3], 1
    %9 = vsyncpa %s8, 0
    loop: start=0, step=1, limit=4
    $region2: #{tpu_custom_call.1} parent=1 // loop_pre_header
      _
    $region3: #{tpu_custom_call.1} parent=1 // loop_header
      %s11 = sphi 0, %s15
      %p12 = scmp.ge.s32.totalorder %s11, 4
      %s21 = sphi 0, %s23
      %s24 = sphi 0, %s21
      %s25 = sphi 0, %s24
      %s41 = sphi 0, %s25
      %s47 = sphi 0, %s49
      %s50 = sphi 0, %s47
      %s51 = sphi 0, %s50
      %s67 = sphi 0, %s51
      %s73 = sphi 0, %s75
      %s76 = sphi 0, %s73
      %s77 = sphi 0, %s76
      %s93 = sphi 0, %s77
    $region4: #{tpu_custom_call.1} parent=1 // loop_header_branch
      %14 = sbr.rel (%p12) target = $region8
    $region5: #{tpu_custom_call.1} parent=1 // loop_body
      %s16 = ssub.s32 %s11, 1
      %s17 = ssub.s32 %s11, 2
      %s18 = sadd.s32 %s11, 1
      %s19 = ssub.s32 %s11, %s18
      %p20 = scmp.eq.s32.totalorder %s19, 0
      %s22 = sadd.s32 %s21, 1
      %s23 = scalar_select %p20, %s21, %s22
      %p26 = pneg %p20
      %p27 = scmp.eq.s32.totalorder %s11, 1
      %p28 = por %p26, %p27
      %p29 = scmp.ne.s32.totalorder %s21, %s24
      %p30 = scmp.eq.s32.totalorder %s11, 0
      %p31 = por %p29, %p30
      %p32 = scmp.ne.s32.totalorder %s21, %s24
      %p33 = scmp.eq.s32.totalorder %s16, 1
      %p34 = por %p32, %p33
      %p35 = scmp.ne.s32.totalorder %s24, %s25
      %p36 = scmp.eq.s32.totalorder %s16, 0
      %p37 = por %p35, %p36
      %p38 = scmp.ne.s32.totalorder %s24, %s25
      %p39 = scmp.eq.s32.totalorder %s17, 1
      %p40 = por %p38, %p39
      %p42 = scmp.ne.s32.totalorder %s25, %s41
      %p43 = scmp.eq.s32.totalorder %s17, 0
      %p44 = por %p42, %p43
      %s45 = ssub.s32 %s11, %s18
      %p46 = scmp.eq.s32.totalorder %s45, 0
      %s48 = sadd.s32 %s47, 1
      %s49 = scalar_select %p46, %s47, %s48
      %p52 = pneg %p46
      %p53 = scmp.eq.s32.totalorder %s11, 1
      %p54 = por %p52, %p53
      %p55 = scmp.ne.s32.totalorder %s47, %s50
      %p56 = scmp.eq.s32.totalorder %s11, 0
      %p57 = por %p55, %p56
      %p58 = scmp.ne.s32.totalorder %s47, %s50
      %p59 = scmp.eq.s32.totalorder %s16, 1
      %p60 = por %p58, %p59
      %p61 = scmp.ne.s32.totalorder %s50, %s51
      %p62 = scmp.eq.s32.totalorder %s16, 0
      %p63 = por %p61, %p62
      %p64 = scmp.ne.s32.totalorder %s50, %s51
      %p65 = scmp.eq.s32.totalorder %s17, 1
      %p66 = por %p64, %p65
      %p68 = scmp.ne.s32.totalorder %s51, %s67
      %p69 = scmp.eq.s32.totalorder %s17, 0
      %p70 = por %p68, %p69
      %s71 = ssub.s32 %s11, %s18
      %p72 = scmp.eq.s32.totalorder %s71, 0
      %s74 = sadd.s32 %s73, 1
      %s75 = scalar_select %p72, %s73, %s74
      %p78 = pneg %p72
      %p79 = scmp.eq.s32.totalorder %s11, 1
      %p80 = por %p78, %p79
      %p81 = scmp.ne.s32.totalorder %s73, %s76
      %p82 = scmp.eq.s32.totalorder %s11, 0
      %p83 = por %p81, %p82
      %p84 = scmp.ne.s32.totalorder %s73, %s76
      %p85 = scmp.eq.s32.totalorder %s16, 1
      %p86 = por %p84, %p85
      %p87 = scmp.ne.s32.totalorder %s76, %s77
      %p88 = scmp.eq.s32.totalorder %s16, 0
      %p89 = por %p87, %p88
      %p90 = scmp.ne.s32.totalorder %s76, %s77
      %p91 = scmp.eq.s32.totalorder %s17, 1
      %p92 = por %p90, %p91
      %p94 = scmp.ne.s32.totalorder %s77, %s93
      %p95 = scmp.eq.s32.totalorder %s17, 0
      %p96 = por %p94, %p95
      %p97 = scmp.le.s32.totalorder 1, %s11
      %p98 = scmp.lt.s32.totalorder %s11, 3
      %p99 = pnand %p97, %p98
      %p100 = pneg %p99
      // Predicated region
      $region9: #{tpu_custom_call.1} parent=5 // pred_check
        _
      $region10: #{tpu_custom_call.1} parent=5 // pred_check_branch
        %102 = sbr.rel (%p99) target = $region12
      $region11: #{tpu_custom_call.1} parent=5 // pred_region
        %s103 = ssub.s32 %s11, 1
      $region12: #{tpu_custom_call.1} parent=5 // pred_fallthru
        _
      %p104 = scmp.lt.s32.totalorder %s11, 2
      // Predicated region
      $region13: #{tpu_custom_call.1} parent=5 // pred_check
        %p105 = pneg %p104
      $region14: #{tpu_custom_call.1} parent=5 // pred_check_branch
        %107 = sbr.rel (%p105) target = $region16
      $region15: #{tpu_custom_call.1} parent=5 // pred_region
        // Predicated region
        $region17: #{tpu_custom_call.1} parent=15 // pred_check
          %p108 = pneg %p31
        $region18: #{tpu_custom_call.1} parent=15 // pred_check_branch
          %110 = sbr.rel (%p108) target = $region20
        $region19: #{tpu_custom_call.1} parent=15 // pred_region
          %p111 = scmp.lt.s32.totalorder %s11, 1
          %s112 = scalar_select %p111, %s11, 1
          %s113 = smul.addr %s112, 8
          %s114 = scalar_lea.vmem %s0, %s113
        $region20: #{tpu_custom_call.1} parent=15 // pred_fallthru
          _
        // Predicated region
        $region21: #{tpu_custom_call.1} parent=15 // pred_check
          %p115 = pneg %p57
        $region22: #{tpu_custom_call.1} parent=15 // pred_check_branch
          %117 = sbr.rel (%p115) target = $region24
        $region23: #{tpu_custom_call.1} parent=15 // pred_region
          %p118 = scmp.lt.s32.totalorder %s11, 1
          %s119 = scalar_select %p118, %s11, 1
          %s120 = smul.addr %s119, 8
          %s121 = scalar_lea.vmem %s1, %s120
        $region24: #{tpu_custom_call.1} parent=15 // pred_fallthru
          _
      $region16: #{tpu_custom_call.1} parent=5 // pred_fallthru
        _
      %p122 = scmp.le.s32.totalorder 1, %s11
      %p123 = scmp.lt.s32.totalorder %s11, 3
      %p124 = pnand %p122, %p123
      %p125 = pneg %p124
      // Predicated region
      $region25: #{tpu_custom_call.1} parent=5 // pred_check
        _
      $region26: #{tpu_custom_call.1} parent=5 // pred_check_branch
        %127 = sbr.rel (%p124) target = $region28
      $region27: #{tpu_custom_call.1} parent=5 // pred_region
        %s128 = ssub.s32 %s11, 1
        %p129 = scmp.lt.s32.totalorder %s16, 1
        %s130 = scalar_select %p129, %s16, 1
        %s131 = smul.addr %s130, 8
        %s132 = scalar_lea.vmem %s0, %s131
        %p133 = pneg %p37
        %p134 = pneg %p34
        %p135 = scmp.lt.s32.totalorder %s16, 1
        %s136 = scalar_select %p135, %s16, 1
        %s137 = smul.addr %s136, 8
        %s138 = scalar_lea.vmem %s1, %s137
        %p139 = pneg %p63
        %p140 = pneg %p60
        %p141 = pneg %p89
        %p142 = pneg %p86
        %s143 = sand.u32 %s76, 1
        %s144 = scalar_lea.sflag [#allocation3], %s143
        %s145 = sand.u32 %s76, 1
        %s146 = scalar_lea.vmem [#allocation2], %s145
        %p147 = scmp.lt.s32.totalorder %s16, 1
        %s148 = scalar_select %p147, %s16, 1
        %s149 = smul.addr %s148, 8
        %s150 = scalar_lea.vmem %s0, %s149
        %p151 = scmp.lt.s32.totalorder %s16, 1
        %s152 = scalar_select %p151, %s16, 1
        %s153 = smul.addr %s152, 8
        %s154 = scalar_lea.vmem %s1, %s153
        %v155 = vld [vmem:[%s150] sm:$0xff]
        %v156 = vld [vmem:[%s154] sm:$0xff]
        %s157 = smul.u32 %s16, 8
        %v158 = vlaneseq
        %v159 = vshrl.u32 %v158, 7
        %v160 = vstv %s157
        %v161 = vadd.s32 %v160, %v159
        %vm162 = vcmp.lt.s32.totalorder %v161, 10
        %vm163 = vcmp.ne.s32.totalorder %v156, 4294967295
        %vm164 = vmand %vm162, %vm163
        %vm165 = vcmask 261120
        %v166 = vsel %vm165, %v155, -inf
        %167 = vmax.xlane.f32.xlu0 %v166
        %v168 = vpop.xlane.xlu0 %167
        %v169 = vlaneseq
        %v170 = vand.u32 %v169, 127
        %171 = vset.pattern.permute.xlu0 0
        %172 = vperm.xlu0 %171, %v156
        %v173 = vpop.permute.xlu0 %172
        %vm174 = vcmp.eq.s32.totalorder %v170, %v173
        %v175 = vsel %vm174, %v155, 0.0
        %v176 = vsel %vm165, %v175, 0.0
        %177 = vadd.xlane.f32.xlu0 %v176
        %v178 = vpop.xlane.xlu0 %177
        %v179 = vsub.f32 %v155, %v168
        %v180 = vmul.f32 %v179, 1.442695
        %v181 = vpow.pop %v180
        %v182 = vsel %vm165, %v181, 0.0
        %183 = vadd.xlane.f32.xlu0 %v182
        %v184 = vpop.xlane.xlu0 %183
        %v185 = vlog2.pop %v184
        %v186 = vmul.f32 %v185, 0.6931472
        %v187 = vadd.f32 %v168, %v186
        %v188 = vsel %vm165, %v155, 0.0
        %189 = vadd.xlane.f32.xlu0 %v188
        %v190 = vpop.xlane.xlu0 %189
        %v191 = vsub.f32 %v187, %v178
        %v192 = vmul.f32 %v191, 0.8967742
        %v193 = vadd.f32 %v192, -0.6684817
        %v194 = vmul.f32 %v187, 32.0
        %v195 = vsub.f32 %v194, %v190
        %v196 = vmul.f32 %v195, 0.0032258064
        %v197 = vadd.f32 %v193, %v196
        %v198 = vsel %vm164, %v197, 0.0
        %vm199 = vcmask 7168
        %v200 = vsel %vm199, %v198, 0.0
        %v201 = vrot.slane %v200, 4
        %v202 = vadd.f32 %v200, %v201
        %v203 = vrot.slane %v202, 2
        %v204 = vadd.f32 %v202, %v203
        %v205 = vrot.slane %v204, 1
        %v206 = vadd.f32 %v204, %v205
        %208 = vset.pattern.permute.xlu0 0
        %209 = vperm.xlu0 %208, %v206
        %v210 = vpop.permute.xlu0 %209
        %212 = vst [vmem:[%s146] sm:$0x1] %v210
        %s213 = sand.u32 %s76, 1
        %s214 = scalar_lea.sflag [#allocation3], %s213
        %s215 = sand.u32 %s76, 1
        %s216 = scalar_lea.vmem [#allocation2], %s215
        // Predicated region
        $region29: #{tpu_custom_call.1} parent=27 // pred_check
          %p217 = pneg %p86
        $region30: #{tpu_custom_call.1} parent=27 // pred_check_branch
          %219 = sbr.rel (%p217) target = $region32
        $region31: #{tpu_custom_call.1} parent=27 // pred_region
          %s221 = ssub.s32 16, 16
          %222 = vsyncadd %s214, %s221
          %s223 = smul.addr %s16, 16
          %s224 = scalar_lea.hbm %s2, %s223
          %s226 = sshll.u32 %s216, 4
          %s227 = int_to_ptr.vmem [resolvable:$true] %s226
          %229 = dma.vmem_to_hbm [thread:$0]  %s227, 16, %s224, %s214
        $region32: #{tpu_custom_call.1} parent=27 // pred_fallthru
          _
      $region28: #{tpu_custom_call.1} parent=5 // pred_fallthru
        _
      %p230 = scmp.le.s32.totalorder 2, %s11
      // Predicated region
      $region33: #{tpu_custom_call.1} parent=5 // pred_check
        %p231 = pneg %p230
      $region34: #{tpu_custom_call.1} parent=5 // pred_check_branch
        %233 = sbr.rel (%p231) target = $region36
      $region35: #{tpu_custom_call.1} parent=5 // pred_region
        %s234 = ssub.s32 %s11, 2
        // Predicated region
        $region37: #{tpu_custom_call.1} parent=35 // pred_check
          %p235 = pneg %p92
        $region38: #{tpu_custom_call.1} parent=35 // pred_check_branch
          %237 = sbr.rel (%p235) target = $region40
        $region39: #{tpu_custom_call.1} parent=35 // pred_region
          %s238 = sand.u32 %s77, 1
          %s239 = scalar_lea.sflag [#allocation3], %s238
          %s240 = sand.u32 %s77, 1
          %s241 = scalar_lea.vmem [#allocation2], %s240
          %242 = dma.done %s239, 16
        $region40: #{tpu_custom_call.1} parent=35 // pred_fallthru
          _
      $region36: #{tpu_custom_call.1} parent=5 // pred_fallthru
        _
    $region6: #{tpu_custom_call.1} parent=1 // loop_footer
      %s15 = sadd.s32 1, %s11
    $region7: #{tpu_custom_call.1} parent=1 // loop_footer_branch
      %10 = sbr.rel target = $region3
    $region8: #{tpu_custom_call.1} parent=1 // loop_exit
      _
    %243 = vsyncpa [#allocation3], 1
    %s244 = scalar_lea.sflag [#allocation3], 1
    %245 = vsyncpa %s244, 1

</llo_original>
